<compile_context>
chip_gen: v6e
topology: v6e:2x2x1
jax: 0.10.0
libtpu: 0.0.40
codegen_flags: <defaults>
</compile_context>

<pallas_src>
import math
import functools

import jax
import jax.numpy as jnp
from jax import lax
from jax.experimental import pallas as pl
from jax.experimental.pallas import tpu as pltpu


def _pick_tile(n: int, max_tile: int) -> int:
    """Largest power-of-two tile <= max_tile that divides n (or n itself if small)."""
    if n <= max_tile:
        return n
    t = max_tile
    while t >= 8:
        if n % t == 0:
            return t
        t //= 2
    return n


# -----------------------------------------------------------------------------
# Kernel 1: Q/K/V projections, tiled over (batch, seq).  Lane-dense (B, S, D) outputs.
# -----------------------------------------------------------------------------
def _qkv_proj_kernel(xq_ref, xk_ref, xv_ref, wq_ref, wk_ref, wv_ref,
                     q_ref, k_ref, v_ref):
    # x* : (1, tm, D) f32 ; w* : (D, D) bf16 ([in, out], softmax scale folded into wq)
    # q/k/v out: (1, tm, D) bf16 (heads NOT split -> lane-dense stores)
    xq = xq_ref[0].astype(jnp.bfloat16)
    xk = xk_ref[0].astype(jnp.bfloat16)
    xv = xv_ref[0].astype(jnp.bfloat16)
    q_ref[0] = jnp.dot(xq, wq_ref[...],
                       preferred_element_type=jnp.float32).astype(q_ref.dtype)
    k_ref[0] = jnp.dot(xk, wk_ref[...],
                       preferred_element_type=jnp.float32).astype(k_ref.dtype)
    v_ref[0] = jnp.dot(xv, wv_ref[...],
                       preferred_element_type=jnp.float32).astype(v_ref.dtype)


def _qkv_proj_self_kernel(x_ref, wqkv_ref, q_ref, k_ref, v_ref, *, d_model):
    # Self-attention fast path: one activation read, one (tm, D) @ (D, 3D) matmul.
    x = x_ref[0].astype(jnp.bfloat16)
    qkv = jnp.dot(x, wqkv_ref[...], preferred_element_type=jnp.float32)   # (tm, 3D) f32
    q_ref[0] = qkv[:, :d_model].astype(q_ref.dtype)
    k_ref[0] = qkv[:, d_model:2 * d_model].astype(k_ref.dtype)
    v_ref[0] = qkv[:, 2 * d_model:].astype(v_ref.dtype)


# TODO(synk): mark the grid-invariant (D, D) / (D, 3D) weight specs with
# pipeline_mode=pl.Buffered(1) (single buffer) once confirmed supported by the target
# Mosaic, to halve their VMEM footprint on v7x's 64 MiB VMEM.
def _qkv_proj(query, key, value, wq_t, wk_t, wv_t, *, tm):
    B, S, D = query.shape
    n_s = S // tm

    flops = 2 * B * S * D * D * 3
    bytes_accessed = 3 * B * S * D * 4 + 3 * D * D * 2 + 3 * B * S * D * 2

    return pl.pallas_call(
        _qkv_proj_kernel,
        out_shape=tuple(jax.ShapeDtypeStruct((B, S, D), jnp.bfloat16) for _ in range(3)),
        grid_spec=pltpu.PrefetchScalarGridSpec(
            num_scalar_prefetch=0,
            grid=(B, n_s),
            in_specs=[
                pl.BlockSpec((1, tm, D), lambda b, i: (b, i, 0)),
                pl.BlockSpec((1, tm, D), lambda b, i: (b, i, 0)),
                pl.BlockSpec((1, tm, D), lambda b, i: (b, i, 0)),
                pl.BlockSpec((D, D), lambda b, i: (0, 0)),
                pl.BlockSpec((D, D), lambda b, i: (0, 0)),
                pl.BlockSpec((D, D), lambda b, i: (0, 0)),
            ],
            out_specs=[
                pl.BlockSpec((1, tm, D), lambda b, i: (b, i, 0)),
                pl.BlockSpec((1, tm, D), lambda b, i: (b, i, 0)),
                pl.BlockSpec((1, tm, D), lambda b, i: (b, i, 0)),
            ],
        ),
        compiler_params=pltpu.CompilerParams(
            dimension_semantics=("parallel", "parallel"),
            vmem_limit_bytes=64 * 1024 * 1024),
        cost_estimate=pl.CostEstimate(flops=flops, transcendentals=0,
                                      bytes_accessed=bytes_accessed),
    )(query, key, value, wq_t, wk_t, wv_t)


def _qkv_proj_self(x, wqkv_t, *, tm):
    B, S, D = x.shape
    n_s = S // tm
    kernel = functools.partial(_qkv_proj_self_kernel, d_model=D)

    flops = 2 * B * S * D * (3 * D)
    bytes_accessed = B * S * D * 4 + 3 * D * D * 2 + 3 * B * S * D * 2

    return pl.pallas_call(
        kernel,
        out_shape=tuple(jax.ShapeDtypeStruct((B, S, D), jnp.bfloat16) for _ in range(3)),
        grid_spec=pltpu.PrefetchScalarGridSpec(
            num_scalar_prefetch=0,
            grid=(B, n_s),
            in_specs=[
                pl.BlockSpec((1, tm, D), lambda b, i: (b, i, 0)),
                pl.BlockSpec((D, 3 * D), lambda b, i: (0, 0)),
            ],
            out_specs=[
                pl.BlockSpec((1, tm, D), lambda b, i: (b, i, 0)),
                pl.BlockSpec((1, tm, D), lambda b, i: (b, i, 0)),
                pl.BlockSpec((1, tm, D), lambda b, i: (b, i, 0)),
            ],
        ),
        compiler_params=pltpu.CompilerParams(
            dimension_semantics=("parallel", "parallel"),
            vmem_limit_bytes=64 * 1024 * 1024),
        cost_estimate=pl.CostEstimate(flops=flops, transcendentals=0,
                                      bytes_accessed=bytes_accessed),
    )(x, wqkv_t)


# -----------------------------------------------------------------------------
# Kernel 2: scaled dot-product attention, per (batch, q-tile), all heads per invocation
# -----------------------------------------------------------------------------
def _attn_kernel(q_ref, k_ref, v_ref, ctx_ref, attn_ref, *, num_heads, d_k):
    # q: (1, tq, D) bf16 (1/sqrt(d_k) already folded into W_q); k/v: (1, S, D) bf16
    # ctx: (1, tq, D) bf16 (lane-dense, heads merged); attn: (1, H, tq, S) bf16
    q = q_ref[0]
    k = k_ref[0]
    v = v_ref[0]

    ctx_parts = []
    for h in range(num_heads):                       # static (unrolled) head loop
        sl = slice(h * d_k, (h + 1) * d_k)
        # Contract on the last axis of both operands: MXU consumes k directly, no k.T.
        scores = lax.dot_general(
            q[:, sl], k[:, sl],
            dimension_numbers=(((1,), (1,)), ((), ())),
            preferred_element_type=jnp.float32)                       # (tq, S) f32

        # Numerically stable softmax in f32; approx reciprocal uses the EUP slot.
        # Note: rows sum to 1 within ~1e-3 relative (documented approximation).
        m = jnp.max(scores, axis=-1, keepdims=True)
        e = jnp.exp(scores - m)
        denom = jnp.sum(e, axis=-1, keepdims=True)
        attn = e * pl.reciprocal(denom, approx=True)                  # (tq, S) f32

        # TODO(synk): training-mode dropout on attention weights (pltpu.prng_*) not implemented.
        attn_ref[0, h] = attn.astype(attn_ref.dtype)                  # bf16 writeback

        ctx_parts.append(jnp.dot(attn.astype(jnp.bfloat16), v[:, sl],
                                 preferred_element_type=jnp.float32))  # (tq, d_k)

    ctx_ref[0] = jnp.concatenate(ctx_parts, axis=-1).astype(ctx_ref.dtype)


def _attention(q, k, v, *, num_heads, tq, attn_dtype):
    B, S, D = q.shape
    d_k = D // num_heads
    n_q = S // tq
    kernel = functools.partial(_attn_kernel, num_heads=num_heads, d_k=d_k)

    flops = 2 * B * num_heads * S * S * d_k * 2
    bytes_accessed = (4 * B * S * D * 2
                      + B * num_heads * S * S * jnp.dtype(attn_dtype).itemsize)

    ctx, attn = pl.pallas_call(
        kernel,
        out_shape=(
            jax.ShapeDtypeStruct((B, S, D), jnp.bfloat16),
            jax.ShapeDtypeStruct((B, num_heads, S, S), attn_dtype),
        ),
        grid_spec=pltpu.PrefetchScalarGridSpec(
            num_scalar_prefetch=0,
            grid=(B, n_q),
            in_specs=[
                pl.BlockSpec((1, tq, D), lambda b, i: (b, i, 0)),
                pl.BlockSpec((1, S, D), lambda b, i: (b, 0, 0)),   # invariant over i
                pl.BlockSpec((1, S, D), lambda b, i: (b, 0, 0)),   # -> fetched once per b
            ],
            out_specs=[
                pl.BlockSpec((1, tq, D), lambda b, i: (b, i, 0)),
                pl.BlockSpec((1, num_heads, tq, S), lambda b, i: (b, 0, i, 0)),
            ],
        ),
        compiler_params=pltpu.CompilerParams(
            dimension_semantics=("parallel", "parallel"),
            vmem_limit_bytes=64 * 1024 * 1024),
        cost_estimate=pl.CostEstimate(flops=flops,
                                      transcendentals=B * num_heads * S * S,
                                      bytes_accessed=bytes_accessed),
    )(q, k, v)
    return ctx, attn


# -----------------------------------------------------------------------------
# Kernel 3: output projection  y = ctx @ W_o^T + b_o, tiled over (batch, seq, N cols)
# -----------------------------------------------------------------------------
def _out_proj_kernel(ctx_ref, wo_ref, bias_ref, o_ref):
    # ctx: (1, tm, D) bf16 (heads already merged, lane-dense; no concat needed)
    # wo : (D, tn) bf16 ; bias: (1, tn) f32 ; o: (1, tm, tn)
    out = jnp.dot(ctx_ref[0], wo_ref[...], preferred_element_type=jnp.float32)
    o_ref[0] = (out + bias_ref[...]).astype(o_ref.dtype)


def _out_proj(ctx, wo_t, bias2d, *, tm, tn, out_dtype):
    # TODO(synk): for very large D also tile the contraction (K) with an f32 VMEM
    # accumulator + pl.when init/finalize; N tiling alone covers v7x up to large D.
    B, S, D = ctx.shape
    n_s = S // tm
    n_n = D // tn

    flops = 2 * B * S * D * D
    bytes_accessed = (B * S * D * 2 + D * D * 2 + D * 4
                      + B * S * D * jnp.dtype(out_dtype).itemsize)

    return pl.pallas_call(
        _out_proj_kernel,
        out_shape=jax.ShapeDtypeStruct((B, S, D), out_dtype),
        grid_spec=pltpu.PrefetchScalarGridSpec(
            num_scalar_prefetch=0,
            grid=(B, n_s, n_n),
            in_specs=[
                pl.BlockSpec((1, tm, D), lambda b, i, j: (b, i, 0)),
                pl.BlockSpec((D, tn), lambda b, i, j: (0, j)),
                pl.BlockSpec((1, tn), lambda b, i, j: (0, j)),
            ],
            out_specs=pl.BlockSpec((1, tm, tn), lambda b, i, j: (b, i, j)),
        ),
        compiler_params=pltpu.CompilerParams(
            dimension_semantics=("parallel", "parallel", "parallel"),
            vmem_limit_bytes=64 * 1024 * 1024),
        cost_estimate=pl.CostEstimate(flops=flops, transcendentals=0,
                                      bytes_accessed=bytes_accessed),
    )(ctx, wo_t, bias2d)


# -----------------------------------------------------------------------------
# Module wrapper
# -----------------------------------------------------------------------------
class MultiHeadAttentionPallas:
    """JAX/Pallas re-implementation of the PyTorch MultiHeadAttention forward."""

    def __init__(self, d_model: int, num_heads: int, dropout: float = 0.1, *, key,
                 attn_weights_dtype=jnp.bfloat16, out_dtype=jnp.float32):
        assert d_model % num_heads == 0
        self.d_model = d_model
        self.num_heads = num_heads
        self.d_k = d_model // num_heads
        self.dropout = dropout                       # eval-mode only (identity)
        self.attn_weights_dtype = attn_weights_dtype
        self.out_dtype = out_dtype

        k1, k2, k3, k4, k5 = jax.random.split(key, 5)
        bound = 1.0 / math.sqrt(d_model)             # nn.Linear default uniform bound
        # Master weights in PyTorch layout [out, in] (f32), used by the reference.
        self.wq = jax.random.uniform(k1, (d_model, d_model), jnp.float32, -bound, bound)
        self.wk = jax.random.uniform(k2, (d_model, d_model), jnp.float32, -bound, bound)
        self.wv = jax.random.uniform(k3, (d_model, d_model), jnp.float32, -bound, bound)
        self.wo = jax.random.uniform(k4, (d_model, d_model), jnp.float32, -bound, bound)
        self.bo = jax.random.uniform(k5, (d_model,), jnp.float32, -bound, bound)

        # Kernel copies: [in, out] layout, bf16, softmax scale folded into W_q so the
        # attention kernel never multiplies the (tq, S) score matrix by a scalar.
        scale = 1.0 / math.sqrt(self.d_k)
        self.wq_t = jnp.asarray(self.wq.T * scale, jnp.bfloat16)
        self.wk_t = jnp.asarray(self.wk.T, jnp.bfloat16)
        self.wv_t = jnp.asarray(self.wv.T, jnp.bfloat16)
        self.wqkv_t = jnp.concatenate([self.wq_t, self.wk_t, self.wv_t], axis=1)  # (D, 3D)
        self.wo_t = jnp.asarray(self.wo.T, jnp.bfloat16)
        self.bo2 = self.bo.reshape(1, d_model)

    def __call__(self, query, key, value, mask=None):
        # TODO(synk): optional attention mask not plumbed into the kernels (mask=None path).
        assert mask is None
        B, S, D = query.shape
        tm = _pick_tile(S, 256)      # projection / output-projection row tile
        tq = _pick_tile(S, 256)      # attention query-row tile
        tn = _pick_tile(D, 512)      # W_o column tile (keeps (D, tn) block in VMEM on v7x)
        assert S % tm == 0 and S % tq == 0 and D % tn == 0

        if query is key and key is value:
            q, k, v = _qkv_proj_self(query, self.wqkv_t, tm=tm)
        else:
            q, k, v = _qkv_proj(query, key, value,
                                self.wq_t, self.wk_t, self.wv_t, tm=tm)

        ctx, attn = _attention(q, k, v, num_heads=self.num_heads, tq=tq,
                               attn_dtype=self.attn_weights_dtype)
        output = _out_proj(ctx, self.wo_t, self.bo2, tm=tm, tn=tn,
                           out_dtype=self.out_dtype)
        return output, attn


# -----------------------------------------------------------------------------
# Pure-JAX reference for a correctness sanity check (f32 master weights)
# -----------------------------------------------------------------------------
def _reference(mha, query, key, value):
    B, S, D = query.shape
    H, dk = mha.num_heads, mha.d_k
    Q = (query @ mha.wq.T).reshape(B, S, H, dk).transpose(0, 2, 1, 3)
    K = (key @ mha.wk.T).reshape(B, S, H, dk).transpose(0, 2, 1, 3)
    V = (value @ mha.wv.T).reshape(B, S, H, dk).transpose(0, 2, 1, 3)
    scores = jnp.einsum("bhqd,bhkd->bhqk", Q, K) / math.sqrt(dk)
    attn = jax.nn.softmax(scores, axis=-1)
    ctx = jnp.einsum("bhqk,bhkd->bhqd", attn, V)
    ctx = ctx.transpose(0, 2, 1, 3).reshape(B, S, D)
    out = ctx @ mha.wo.T + mha.bo
    return out, attn


if __name__ == "__main__":
    batch, seq_len, d_model, num_heads = 2, 8, 32, 4

    root = jax.random.PRNGKey(0)
    k_params, k_q, k_k, k_v = jax.random.split(root, 4)

    mha = MultiHeadAttentionPallas(d_model, num_heads, dropout=0.1, key=k_params)

    query = jax.random.normal(k_q, (batch, seq_len, d_model), jnp.float32)
    key = jax.random.normal(k_k, (batch, seq_len, d_model), jnp.float32)
    value = jax.random.normal(k_v, (batch, seq_len, d_model), jnp.float32)

    # Cross-attention path (distinct q/k/v).
    output, attn_weights = mha(query, key, value)
    jax.block_until_ready(output)
    jax.block_until_ready(attn_weights)

    assert output.shape == (batch, seq_len, d_model)
    assert attn_weights.shape == (batch, num_heads, seq_len, seq_len)

    # bf16 matmuls + bf16 attn weights + approx reciprocal -> loose tolerance vs f32 ref.
    ref_out, ref_attn = _reference(mha, query, key, value)
    assert jnp.allclose(output, ref_out, atol=5e-2, rtol=5e-2)
    assert jnp.allclose(attn_weights.astype(jnp.float32), ref_attn, atol=5e-2, rtol=5e-2)

    # Self-attention fused path (single activation read, (D, 3D) weight).
    out_self, attn_self = mha(query, query, query)
    jax.block_until_ready(out_self)
    jax.block_until_ready(attn_self)
    ref_out_s, ref_attn_s = _reference(mha, query, query, query)
    assert jnp.allclose(out_self, ref_out_s, atol=5e-2, rtol=5e-2)
    assert jnp.allclose(attn_self.astype(jnp.float32), ref_attn_s, atol=5e-2, rtol=5e-2)

    print("KERNEL_OK")
</pallas_src>

<mosaic_0001>
module attributes {stable_mosaic.version = 11 : i64} {
  func.func @_qkv_proj_kernel(%arg0: i32, %arg1: i32, %arg2: memref<1x8x32xf32, #tpu.memory_space<vmem>>, %arg3: memref<1x8x32xf32, #tpu.memory_space<vmem>>, %arg4: memref<1x8x32xf32, #tpu.memory_space<vmem>>, %arg5: memref<32x32xbf16, #tpu.memory_space<vmem>>, %arg6: memref<32x32xbf16, #tpu.memory_space<vmem>>, %arg7: memref<32x32xbf16, #tpu.memory_space<vmem>>, %arg8: memref<1x8x32xbf16, #tpu.memory_space<vmem>>, %arg9: memref<1x8x32xbf16, #tpu.memory_space<vmem>>, %arg10: memref<1x8x32xbf16, #tpu.memory_space<vmem>>) attributes {dimension_semantics = [#tpu.dimension_semantics<parallel>, #tpu.dimension_semantics<parallel>], iteration_bounds = array<i64: 2, 1>, scalar_prefetch = 0 : i64, scratch_operands = 0 : i64, tpu.core_type = #tpu.core_type<tc>, window_params = [{transform_indices = @transform_0, window_bounds = array<i64: 1, 8, 32>}, {transform_indices = @transform_1, window_bounds = array<i64: 1, 8, 32>}, {transform_indices = @transform_2, window_bounds = array<i64: 1, 8, 32>}, {pipeline_mode = #tpu.pipeline_mode<synchronous>, transform_indices = @transform_3, window_bounds = array<i64: 32, 32>}, {pipeline_mode = #tpu.pipeline_mode<synchronous>, transform_indices = @transform_4, window_bounds = array<i64: 32, 32>}, {pipeline_mode = #tpu.pipeline_mode<synchronous>, transform_indices = @transform_5, window_bounds = array<i64: 32, 32>}, {transform_indices = @transform_6, window_bounds = array<i64: 1, 8, 32>}, {transform_indices = @transform_7, window_bounds = array<i64: 1, 8, 32>}, {transform_indices = @transform_8, window_bounds = array<i64: 1, 8, 32>}]} {
    %c0 = arith.constant 0 : index
    %c0_0 = arith.constant 0 : index
    %c0_1 = arith.constant 0 : index
    %0 = vector.load %arg2[%c0, %c0_0, %c0_1] : memref<1x8x32xf32, #tpu.memory_space<vmem>>, vector<1x8x32xf32>
    %1 = vector.shape_cast %0 : vector<1x8x32xf32> to vector<8x32xf32>
    %2 = arith.truncf %1 : vector<8x32xf32> to vector<8x32xbf16>
    %c0_2 = arith.constant 0 : index
    %c0_3 = arith.constant 0 : index
    %c0_4 = arith.constant 0 : index
    %3 = vector.load %arg3[%c0_2, %c0_3, %c0_4] : memref<1x8x32xf32, #tpu.memory_space<vmem>>, vector<1x8x32xf32>
    %4 = vector.shape_cast %3 : vector<1x8x32xf32> to vector<8x32xf32>
    %5 = arith.truncf %4 : vector<8x32xf32> to vector<8x32xbf16>
    %c0_5 = arith.constant 0 : index
    %c0_6 = arith.constant 0 : index
    %c0_7 = arith.constant 0 : index
    %6 = vector.load %arg4[%c0_5, %c0_6, %c0_7] : memref<1x8x32xf32, #tpu.memory_space<vmem>>, vector<1x8x32xf32>
    %7 = vector.shape_cast %6 : vector<1x8x32xf32> to vector<8x32xf32>
    %8 = arith.truncf %7 : vector<8x32xf32> to vector<8x32xbf16>
    %c0_8 = arith.constant 0 : index
    %c0_9 = arith.constant 0 : index
    %9 = vector.load %arg5[%c0_8, %c0_9] : memref<32x32xbf16, #tpu.memory_space<vmem>>, vector<32x32xbf16>
    %cst = arith.constant dense<0.000000e+00> : vector<8x32xf32>
    %10 = tpu.matmul %2, %9, %cst {dimension_numbers = #tpu.dot_dimension_numbers<[1], [0], [0], [1], [0, 0, 1, 1], [], []>} : vector<8x32xbf16>, vector<32x32xbf16>, vector<8x32xf32> -> vector<8x32xf32>
    %11 = arith.truncf %10 : vector<8x32xf32> to vector<8x32xbf16>
    %c0_10 = arith.constant 0 : index
    %c0_11 = arith.constant 0 : index
    %c0_12 = arith.constant 0 : index
    %12 = vector.load %arg8[%c0_10, %c0_11, %c0_12] : memref<1x8x32xbf16, #tpu.memory_space<vmem>>, vector<1x8x32xbf16>
    %13 = vector.shape_cast %12 : vector<1x8x32xbf16> to vector<8x32xbf16>
    %14 = vector.shape_cast %11 : vector<8x32xbf16> to vector<1x8x32xbf16>
    tpu.vector_store %arg8[%c0_10, %c0_11, %c0_12], %14 {strides = array<i32>} : memref<1x8x32xbf16, #tpu.memory_space<vmem>>, vector<1x8x32xbf16>,
    %c0_13 = arith.constant 0 : index
    %c0_14 = arith.constant 0 : index
    %15 = vector.load %arg6[%c0_13, %c0_14] : memref<32x32xbf16, #tpu.memory_space<vmem>>, vector<32x32xbf16>
    %cst_15 = arith.constant dense<0.000000e+00> : vector<8x32xf32>
    %16 = tpu.matmul %5, %15, %cst_15 {dimension_numbers = #tpu.dot_dimension_numbers<[1], [0], [0], [1], [0, 0, 1, 1], [], []>} : vector<8x32xbf16>, vector<32x32xbf16>, vector<8x32xf32> -> vector<8x32xf32>
    %17 = arith.truncf %16 : vector<8x32xf32> to vector<8x32xbf16>
    %c0_16 = arith.constant 0 : index
    %c0_17 = arith.constant 0 : index
    %c0_18 = arith.constant 0 : index
    %18 = vector.load %arg9[%c0_16, %c0_17, %c0_18] : memref<1x8x32xbf16, #tpu.memory_space<vmem>>, vector<1x8x32xbf16>
    %19 = vector.shape_cast %18 : vector<1x8x32xbf16> to vector<8x32xbf16>
    %20 = vector.shape_cast %17 : vector<8x32xbf16> to vector<1x8x32xbf16>
    tpu.vector_store %arg9[%c0_16, %c0_17, %c0_18], %20 {strides = array<i32>} : memref<1x8x32xbf16, #tpu.memory_space<vmem>>, vector<1x8x32xbf16>,
    %c0_19 = arith.constant 0 : index
    %c0_20 = arith.constant 0 : index
    %21 = vector.load %arg7[%c0_19, %c0_20] : memref<32x32xbf16, #tpu.memory_space<vmem>>, vector<32x32xbf16>
    %cst_21 = arith.constant dense<0.000000e+00> : vector<8x32xf32>
    %22 = tpu.matmul %8, %21, %cst_21 {dimension_numbers = #tpu.dot_dimension_numbers<[1], [0], [0], [1], [0, 0, 1, 1], [], []>} : vector<8x32xbf16>, vector<32x32xbf16>, vector<8x32xf32> -> vector<8x32xf32>
    %23 = arith.truncf %22 : vector<8x32xf32> to vector<8x32xbf16>
    %c0_22 = arith.constant 0 : index
    %c0_23 = arith.constant 0 : index
    %c0_24 = arith.constant 0 : index
    %24 = vector.load %arg10[%c0_22, %c0_23, %c0_24] : memref<1x8x32xbf16, #tpu.memory_space<vmem>>, vector<1x8x32xbf16>
    %25 = vector.shape_cast %24 : vector<1x8x32xbf16> to vector<8x32xbf16>
    %26 = vector.shape_cast %23 : vector<8x32xbf16> to vector<1x8x32xbf16>
    tpu.vector_store %arg10[%c0_22, %c0_23, %c0_24], %26 {strides = array<i32>} : memref<1x8x32xbf16, #tpu.memory_space<vmem>>, vector<1x8x32xbf16>,
    return
  }
  func.func @transform_0(%arg0: i32, %arg1: i32) -> (i32, i32, i32) {
    %c0_i32 = arith.constant 0 : i32
    %c0_i32_0 = arith.constant 0 : i32
    return %arg0, %arg1, %c0_i32 : i32, i32, i32
  }
  func.func @transform_1(%arg0: i32, %arg1: i32) -> (i32, i32, i32) {
    %c0_i32 = arith.constant 0 : i32
    %c0_i32_0 = arith.constant 0 : i32
    return %arg0, %arg1, %c0_i32 : i32, i32, i32
  }
  func.func @transform_2(%arg0: i32, %arg1: i32) -> (i32, i32, i32) {
    %c0_i32 = arith.constant 0 : i32
    %c0_i32_0 = arith.constant 0 : i32
    return %arg0, %arg1, %c0_i32 : i32, i32, i32
  }
  func.func @transform_3(%arg0: i32, %arg1: i32) -> (i32, i32) {
    %c0_i32 = arith.constant 0 : i32
    %c0_i32_0 = arith.constant 0 : i32
    %c0_i32_1 = arith.constant 0 : i32
    return %c0_i32, %c0_i32_0 : i32, i32
  }
  func.func @transform_4(%arg0: i32, %arg1: i32) -> (i32, i32) {
    %c0_i32 = arith.constant 0 : i32
    %c0_i32_0 = arith.constant 0 : i32
    %c0_i32_1 = arith.constant 0 : i32
    return %c0_i32, %c0_i32_0 : i32, i32
  }
  func.func @transform_5(%arg0: i32, %arg1: i32) -> (i32, i32) {
    %c0_i32 = arith.constant 0 : i32
    %c0_i32_0 = arith.constant 0 : i32
    %c0_i32_1 = arith.constant 0 : i32
    return %c0_i32, %c0_i32_0 : i32, i32
  }
  func.func @transform_6(%arg0: i32, %arg1: i32) -> (i32, i32, i32) {
    %c0_i32 = arith.constant 0 : i32
    %c0_i32_0 = arith.constant 0 : i32
    return %arg0, %arg1, %c0_i32 : i32, i32, i32
  }
  func.func @transform_7(%arg0: i32, %arg1: i32) -> (i32, i32, i32) {
    %c0_i32 = arith.constant 0 : i32
    %c0_i32_0 = arith.constant 0 : i32
    return %arg0, %arg1, %c0_i32 : i32, i32, i32
  }
  func.func @transform_8(%arg0: i32, %arg1: i32) -> (i32, i32, i32) {
    %c0_i32 = arith.constant 0 : i32
    %c0_i32_0 = arith.constant 0 : i32
    return %arg0, %arg1, %c0_i32 : i32, i32, i32
  }
}

</mosaic_0001>

<llo_original>
// kernel: tpu_custom_call.1
$region0: #{tpu_custom_call.1}
  #allocation0 [shape = 'u32[]', space=smem, size = 0x4, offset = 0x4, fixed_abs, tag = 'smem constant byte address 0x4 - core index']
  #allocation1 [shape = 'u32[144,128]{1,0:T(1,128)}', space=vmem, size = 0x12000, scoped, tag = 'internal scratch']
  %s0 = inlined_call_operand.hbm [shape: f32[2,8,32], index: 0, kind: input, shape index: {}]
  %s1 = inlined_call_operand.hbm [shape: f32[2,8,32], index: 1, kind: input, shape index: {}]
  %s2 = inlined_call_operand.hbm [shape: f32[2,8,32], index: 2, kind: input, shape index: {}]
  %s3 = inlined_call_operand.hbm [shape: bf16[32,32], index: 3, kind: input, shape index: {}]
  %s4 = inlined_call_operand.hbm [shape: bf16[32,32], index: 4, kind: input, shape index: {}]
  %s5 = inlined_call_operand.hbm [shape: bf16[32,32], index: 5, kind: input, shape index: {}]
  %s6 = inlined_call_operand.hbm [shape: bf16[2,8,32], index: 6, kind: output, shape index: {0}]
  %s7 = inlined_call_operand.hbm [shape: bf16[2,8,32], index: 7, kind: output, shape index: {1}]
  %s8 = inlined_call_operand.hbm [shape: bf16[2,8,32], index: 8, kind: output, shape index: {2}]
  %9 = xla_tuple %s6, %s7, %s8
  %s10 = sld [smem:[#allocation0]]
  $region97: #{tpu_custom_call.1} parent=0
    _
  %s12 = ssub.s32 1, %s10
  %s13 = scalar_select 0, %s12, %s10
  $region1: #{tpu_custom_call.1} parent=0
    #allocation2 [shape = 'u8[8192]{0}', space=vmem, size = 0x2000, scoped, tag = 'input window, operand 0']
    #allocation3 [shape = 's32[2]{0}', space=sflag, size = 0x8, scoped, tag = 'scoped memory for tpu_custom_call.1']
    #allocation4 [shape = 's32[2]{0}', space=sflag, size = 0x8, scoped, tag = 'scoped memory for tpu_custom_call.1']
    #allocation5 [shape = 'u8[8192]{0}', space=vmem, size = 0x2000, scoped, tag = 'input window, operand 1']
    #allocation6 [shape = 's32[2]{0}', space=sflag, size = 0x8, scoped, tag = 'scoped memory for tpu_custom_call.1']
    #allocation7 [shape = 'u8[8192]{0}', space=vmem, size = 0x2000, scoped, tag = 'input window, operand 2']
    #allocation8 [shape = 'u8[8192]{0}', space=vmem, size = 0x2000, scoped, tag = 'input window, operand 3, single buffered']
    #allocation9 [shape = 's32[1]{0}', space=sflag, size = 0x4, scoped, tag = 'scoped memory for tpu_custom_call.1']
    #allocation10 [shape = 'u8[8192]{0}', space=vmem, size = 0x2000, scoped, tag = 'input window, operand 4, single buffered']
    #allocation11 [shape = 'u8[8192]{0}', space=vmem, size = 0x2000, scoped, tag = 'input window, operand 5, single buffered']
    #allocation12 [shape = 's32[1]{0}', space=sflag, size = 0x4, scoped, tag = 'scoped memory for tpu_custom_call.1']
    #allocation13 [shape = 'u8[4096]{0}', space=vmem, size = 0x1000, scoped, tag = 'output window, operand 0']
    #allocation14 [shape = 'u8[4096]{0}', space=vmem, size = 0x1000, scoped, tag = 'output window, operand 1']
    #allocation15 [shape = 's32[2]{0}', space=sflag, size = 0x8, scoped, tag = 'scoped memory for tpu_custom_call.1']
    #allocation16 [shape = 'u8[4096]{0}', space=vmem, size = 0x1000, scoped, tag = 'output window, operand 2']
    %14 = vsyncpa [#allocation3], 0
    %s15 = scalar_lea.sflag [#allocation3], 1
    %16 = vsyncpa %s15, 0
    %17 = vsyncpa [#allocation6], 0
    %s18 = scalar_lea.sflag [#allocation6], 1
    %19 = vsyncpa %s18, 0
    %20 = vsyncpa [#allocation9], 0
    %21 = vsyncpa [#allocation12], 0
    %22 = vsyncpa [#allocation4], 0
    %s23 = scalar_lea.sflag [#allocation4], 1
    %24 = vsyncpa %s23, 0
    %25 = vsyncpa [#allocation15], 0
    %s26 = scalar_lea.sflag [#allocation15], 1
    %27 = vsyncpa %s26, 0
    loop: start=0, step=1, limit=4
    $region2: #{tpu_custom_call.1} parent=1 // loop_pre_header
      _
    $region3: #{tpu_custom_call.1} parent=1 // loop_header
      %s29 = sphi 0, %s33
      %p30 = scmp.ge.s32.totalorder %s29, 4
      %s36 = sphi 0, %s48
      %s37 = sphi 0, %s44
      %s38 = sphi 0, %s36
      %s39 = sphi 0, %s37
      %s40 = sphi 0, %s38
      %s41 = sphi 0, %s39
      %s53 = sphi 0, %s55
      %s56 = sphi 0, %s53
      %s57 = sphi 0, %s56
      %s73 = sphi 0, %s57
      %s81 = sphi 0, %s83
      %s84 = sphi 0, %s81
      %s85 = sphi 0, %s84
      %s101 = sphi 0, %s85
      %s109 = sphi 0, %s111
      %s112 = sphi 0, %s109
      %s113 = sphi 0, %s112
      %s129 = sphi 0, %s113
      %s133 = sphi 0, %s133
      %s135 = sphi 0, %s133
      %s136 = sphi 0, %s135
      %s150 = sphi 0, %s136
      %s154 = sphi 0, %s154
      %s156 = sphi 0, %s154
      %s157 = sphi 0, %s156
      %s171 = sphi 0, %s157
      %s175 = sphi 0, %s175
      %s177 = sphi 0, %s175
      %s178 = sphi 0, %s177
      %s192 = sphi 0, %s178
      %s200 = sphi 0, %s202
      %s203 = sphi 0, %s200
      %s204 = sphi 0, %s203
      %s220 = sphi 0, %s204
      %s228 = sphi 0, %s230
      %s231 = sphi 0, %s228
      %s232 = sphi 0, %s231
      %s248 = sphi 0, %s232
      %s256 = sphi 0, %s258
      %s259 = sphi 0, %s256
      %s260 = sphi 0, %s259
      %s276 = sphi 0, %s260
    $region4: #{tpu_custom_call.1} parent=1 // loop_header_branch
      %32 = sbr.rel (%p30) target = $region8
    $region5: #{tpu_custom_call.1} parent=1 // loop_body
      %s34 = ssub.s32 %s29, 1
      %s35 = ssub.s32 %s29, 2
      %s42 = sadd.s32 1, %s37
      %p43 = scmp.ge.s32.totalorder %s42, 1
      %s44 = scalar_select %p43, 0, %s42
      %s45 = sadd.s32 1, %s36
      %s46 = scalar_select %p43, %s45, %s36
      %p47 = scmp.ge.s32.totalorder %s46, 2
      %s48 = scalar_select %p47, 0, %s46
      %s49 = ssub.s32 %s36, %s48
      %s50 = ssub.s32 %s37, %s44
      %s51 = sor.u32 %s49, %s50
      %p52 = scmp.eq.s32.totalorder %s51, 0
      %s54 = sadd.s32 %s53, 1
      %s55 = scalar_select %p52, %s53, %s54
      %p58 = pneg %p52
      %p59 = scmp.eq.s32.totalorder %s29, 1
      %p60 = por %p58, %p59
      %p61 = scmp.ne.s32.totalorder %s53, %s56
      %p62 = scmp.eq.s32.totalorder %s29, 0
      %p63 = por %p61, %p62
      %p64 = scmp.ne.s32.totalorder %s53, %s56
      %p65 = scmp.eq.s32.totalorder %s34, 1
      %p66 = por %p64, %p65
      %p67 = scmp.ne.s32.totalorder %s56, %s57
      %p68 = scmp.eq.s32.totalorder %s34, 0
      %p69 = por %p67, %p68
      %p70 = scmp.ne.s32.totalorder %s56, %s57
      %p71 = scmp.eq.s32.totalorder %s35, 1
      %p72 = por %p70, %p71
      %p74 = scmp.ne.s32.totalorder %s57, %s73
      %p75 = scmp.eq.s32.totalorder %s35, 0
      %p76 = por %p74, %p75
      %s77 = ssub.s32 %s36, %s48
      %s78 = ssub.s32 %s37, %s44
      %s79 = sor.u32 %s77, %s78
      %p80 = scmp.eq.s32.totalorder %s79, 0
      %s82 = sadd.s32 %s81, 1
      %s83 = scalar_select %p80, %s81, %s82
      %p86 = pneg %p80
      %p87 = scmp.eq.s32.totalorder %s29, 1
      %p88 = por %p86, %p87
      %p89 = scmp.ne.s32.totalorder %s81, %s84
      %p90 = scmp.eq.s32.totalorder %s29, 0
      %p91 = por %p89, %p90
      %p92 = scmp.ne.s32.totalorder %s81, %s84
      %p93 = scmp.eq.s32.totalorder %s34, 1
      %p94 = por %p92, %p93
      %p95 = scmp.ne.s32.totalorder %s84, %s85
      %p96 = scmp.eq.s32.totalorder %s34, 0
      %p97 = por %p95, %p96
      %p98 = scmp.ne.s32.totalorder %s84, %s85
      %p99 = scmp.eq.s32.totalorder %s35, 1
      %p100 = por %p98, %p99
      %p102 = scmp.ne.s32.totalorder %s85, %s101
      %p103 = scmp.eq.s32.totalorder %s35, 0
      %p104 = por %p102, %p103
      %s105 = ssub.s32 %s36, %s48
      %s106 = ssub.s32 %s37, %s44
      %s107 = sor.u32 %s105, %s106
      %p108 = scmp.eq.s32.totalorder %s107, 0
      %s110 = sadd.s32 %s109, 1
      %s111 = scalar_select %p108, %s109, %s110
      %p114 = pneg %p108
      %p115 = scmp.eq.s32.totalorder %s29, 1
      %p116 = por %p114, %p115
      %p117 = scmp.ne.s32.totalorder %s109, %s112
      %p118 = scmp.eq.s32.totalorder %s29, 0
      %p119 = por %p117, %p118
      %p120 = scmp.ne.s32.totalorder %s109, %s112
      %p121 = scmp.eq.s32.totalorder %s34, 1
      %p122 = por %p120, %p121
      %p123 = scmp.ne.s32.totalorder %s112, %s113
      %p124 = scmp.eq.s32.totalorder %s34, 0
      %p125 = por %p123, %p124
      %p126 = scmp.ne.s32.totalorder %s112, %s113
      %p127 = scmp.eq.s32.totalorder %s35, 1
      %p128 = por %p126, %p127
      %p130 = scmp.ne.s32.totalorder %s113, %s129
      %p131 = scmp.eq.s32.totalorder %s35, 0
      %p132 = por %p130, %p131
      %s134 = sadd.s32 %s133, 1
      %p137 = scmp.eq.s32.totalorder %s29, 1
      %p138 = scmp.ne.s32.totalorder %s133, %s135
      %p139 = scmp.eq.s32.totalorder %s29, 0
      %p140 = por %p138, %p139
      %p141 = scmp.ne.s32.totalorder %s133, %s135
      %p142 = scmp.eq.s32.totalorder %s34, 1
      %p143 = por %p141, %p142
      %p144 = scmp.ne.s32.totalorder %s135, %s136
      %p145 = scmp.eq.s32.totalorder %s34, 0
      %p146 = por %p144, %p145
      %p147 = scmp.ne.s32.totalorder %s135, %s136
      %p148 = scmp.eq.s32.totalorder %s35, 1
      %p149 = por %p147, %p148
      %p151 = scmp.ne.s32.totalorder %s136, %s150
      %p152 = scmp.eq.s32.totalorder %s35, 0
      %p153 = por %p151, %p152
      %s155 = sadd.s32 %s154, 1
      %p158 = scmp.eq.s32.totalorder %s29, 1
      %p159 = scmp.ne.s32.totalorder %s154, %s156
      %p160 = scmp.eq.s32.totalorder %s29, 0
      %p161 = por %p159, %p160
      %p162 = scmp.ne.s32.totalorder %s154, %s156
      %p163 = scmp.eq.s32.totalorder %s34, 1
      %p164 = por %p162, %p163
      %p165 = scmp.ne.s32.totalorder %s156, %s157
      %p166 = scmp.eq.s32.totalorder %s34, 0
      %p167 = por %p165, %p166
      %p168 = scmp.ne.s32.totalorder %s156, %s157
      %p169 = scmp.eq.s32.totalorder %s35, 1
      %p170 = por %p168, %p169
      %p172 = scmp.ne.s32.totalorder %s157, %s171
      %p173 = scmp.eq.s32.totalorder %s35, 0
      %p174 = por %p172, %p173
      %s176 = sadd.s32 %s175, 1
      %p179 = scmp.eq.s32.totalorder %s29, 1
      %p180 = scmp.ne.s32.totalorder %s175, %s177
      %p181 = scmp.eq.s32.totalorder %s29, 0
      %p182 = por %p180, %p181
      %p183 = scmp.ne.s32.totalorder %s175, %s177
      %p184 = scmp.eq.s32.totalorder %s34, 1
      %p185 = por %p183, %p184
      %p186 = scmp.ne.s32.totalorder %s177, %s178
      %p187 = scmp.eq.s32.totalorder %s34, 0
      %p188 = por %p186, %p187
      %p189 = scmp.ne.s32.totalorder %s177, %s178
      %p190 = scmp.eq.s32.totalorder %s35, 1
      %p191 = por %p189, %p190
      %p193 = scmp.ne.s32.totalorder %s178, %s192
      %p194 = scmp.eq.s32.totalorder %s35, 0
      %p195 = por %p193, %p194
      %s196 = ssub.s32 %s36, %s48
      %s197 = ssub.s32 %s37, %s44
      %s198 = sor.u32 %s196, %s197
      %p199 = scmp.eq.s32.totalorder %s198, 0
      %s201 = sadd.s32 %s200, 1
      %s202 = scalar_select %p199, %s200, %s201
      %p205 = pneg %p199
      %p206 = scmp.eq.s32.totalorder %s29, 1
      %p207 = por %p205, %p206
      %p208 = scmp.ne.s32.totalorder %s200, %s203
      %p209 = scmp.eq.s32.totalorder %s29, 0
      %p210 = por %p208, %p209
      %p211 = scmp.ne.s32.totalorder %s200, %s203
      %p212 = scmp.eq.s32.totalorder %s34, 1
      %p213 = por %p211, %p212
      %p214 = scmp.ne.s32.totalorder %s203, %s204
      %p215 = scmp.eq.s32.totalorder %s34, 0
      %p216 = por %p214, %p215
      %p217 = scmp.ne.s32.totalorder %s203, %s204
      %p218 = scmp.eq.s32.totalorder %s35, 1
      %p219 = por %p217, %p218
      %p221 = scmp.ne.s32.totalorder %s204, %s220
      %p222 = scmp.eq.s32.totalorder %s35, 0
      %p223 = por %p221, %p222
      %s224 = ssub.s32 %s36, %s48
      %s225 = ssub.s32 %s37, %s44
      %s226 = sor.u32 %s224, %s225
      %p227 = scmp.eq.s32.totalorder %s226, 0
      %s229 = sadd.s32 %s228, 1
      %s230 = scalar_select %p227, %s228, %s229
      %p233 = pneg %p227
      %p234 = scmp.eq.s32.totalorder %s29, 1
      %p235 = por %p233, %p234
      %p236 = scmp.ne.s32.totalorder %s228, %s231
      %p237 = scmp.eq.s32.totalorder %s29, 0
      %p238 = por %p236, %p237
      %p239 = scmp.ne.s32.totalorder %s228, %s231
      %p240 = scmp.eq.s32.totalorder %s34, 1
      %p241 = por %p239, %p240
      %p242 = scmp.ne.s32.totalorder %s231, %s232
      %p243 = scmp.eq.s32.totalorder %s34, 0
      %p244 = por %p242, %p243
      %p245 = scmp.ne.s32.totalorder %s231, %s232
      %p246 = scmp.eq.s32.totalorder %s35, 1
      %p247 = por %p245, %p246
      %p249 = scmp.ne.s32.totalorder %s232, %s248
      %p250 = scmp.eq.s32.totalorder %s35, 0
      %p251 = por %p249, %p250
      %s252 = ssub.s32 %s36, %s48
      %s253 = ssub.s32 %s37, %s44
      %s254 = sor.u32 %s252, %s253
      %p255 = scmp.eq.s32.totalorder %s254, 0
      %s257 = sadd.s32 %s256, 1
      %s258 = scalar_select %p255, %s256, %s257
      %p261 = pneg %p255
      %p262 = scmp.eq.s32.totalorder %s29, 1
      %p263 = por %p261, %p262
      %p264 = scmp.ne.s32.totalorder %s256, %s259
      %p265 = scmp.eq.s32.totalorder %s29, 0
      %p266 = por %p264, %p265
      %p267 = scmp.ne.s32.totalorder %s256, %s259
      %p268 = scmp.eq.s32.totalorder %s34, 1
      %p269 = por %p267, %p268
      %p270 = scmp.ne.s32.totalorder %s259, %s260
      %p271 = scmp.eq.s32.totalorder %s34, 0
      %p272 = por %p270, %p271
      %p273 = scmp.ne.s32.totalorder %s259, %s260
      %p274 = scmp.eq.s32.totalorder %s35, 1
      %p275 = por %p273, %p274
      %p277 = scmp.ne.s32.totalorder %s260, %s276
      %p278 = scmp.eq.s32.totalorder %s35, 0
      %p279 = por %p277, %p278
      %p280 = scmp.le.s32.totalorder 1, %s29
      %p281 = scmp.lt.s32.totalorder %s29, 3
      %p282 = pnand %p280, %p281
      %p283 = pneg %p282
      // Predicated region
      $region9: #{tpu_custom_call.1} parent=5 // pred_check
        _
      $region10: #{tpu_custom_call.1} parent=5 // pred_check_branch
        %285 = sbr.rel (%p282) target = $region12
      $region11: #{tpu_custom_call.1} parent=5 // pred_region
        %s286 = ssub.s32 %s29, 1
        // Predicated region
        $region13: #{tpu_custom_call.1} parent=11 // pred_check
          %p287 = pneg %p146
        $region14: #{tpu_custom_call.1} parent=11 // pred_check_branch
          %289 = sbr.rel (%p287) target = $region16
        $region15: #{tpu_custom_call.1} parent=11 // pred_region
          %s291 = ssub.s32 256, 256
          %292 = vsyncadd [#allocation9], %s291
          %s293 = sshll.u32 [#allocation8], 4
          %s294 = int_to_ptr.vmem [resolvable:$true] %s293
          %299 = dma.hbm_to_vmem [thread:$0]  %s3, 256, %s294, [#allocation9], 64, 64, 4
        $region16: #{tpu_custom_call.1} parent=11 // pred_fallthru
          _
        // Predicated region
        $region17: #{tpu_custom_call.1} parent=11 // pred_check
          %p300 = pneg %p167
        $region18: #{tpu_custom_call.1} parent=11 // pred_check_branch
          %302 = sbr.rel (%p300) target = $region20
        $region19: #{tpu_custom_call.1} parent=11 // pred_region
          %s304 = ssub.s32 256, 256
          %305 = vsyncadd [#allocation9], %s304
          %s306 = sshll.u32 [#allocation10], 4
          %s307 = int_to_ptr.vmem [resolvable:$true] %s306
          %312 = dma.hbm_to_vmem [thread:$0]  %s4, 256, %s307, [#allocation9], 64, 64, 4
        $region20: #{tpu_custom_call.1} parent=11 // pred_fallthru
          _
        // Predicated region
        $region21: #{tpu_custom_call.1} parent=11 // pred_check
          %p313 = pneg %p188
        $region22: #{tpu_custom_call.1} parent=11 // pred_check_branch
          %315 = sbr.rel (%p313) target = $region24
        $region23: #{tpu_custom_call.1} parent=11 // pred_region
          %s317 = ssub.s32 256, 256
          %318 = vsyncadd [#allocation12], %s317
          %s319 = sshll.u32 [#allocation11], 4
          %s320 = int_to_ptr.vmem [resolvable:$true] %s319
          %325 = dma.hbm_to_vmem [thread:$0]  %s5, 256, %s320, [#allocation12], 64, 64, 4
        $region24: #{tpu_custom_call.1} parent=11 // pred_fallthru
          _
      $region12: #{tpu_custom_call.1} parent=5 // pred_fallthru
        _
      %p326 = scmp.lt.s32.totalorder %s29, 2
      // Predicated region
      $region25: #{tpu_custom_call.1} parent=5 // pred_check
        %p327 = pneg %p326
      $region26: #{tpu_custom_call.1} parent=5 // pred_check_branch
        %329 = sbr.rel (%p327) target = $region28
      $region27: #{tpu_custom_call.1} parent=5 // pred_region
        // Predicated region
        $region29: #{tpu_custom_call.1} parent=27 // pred_check
          %p330 = pneg %p63
        $region30: #{tpu_custom_call.1} parent=27 // pred_check_branch
          %332 = sbr.rel (%p330) target = $region32
        $region31: #{tpu_custom_call.1} parent=27 // pred_region
          %s333 = sand.u32 %s53, 1
          %s334 = scalar_lea.sflag [#allocation3], %s333
          %s335 = sand.u32 %s53, 1
          %s336 = smul.addr %s335, 8
          %s337 = scalar_lea.vmem [#allocation2], %s336
          %s339 = ssub.s32 128, 128
          %340 = vsyncadd %s334, %s339
          %s341 = sadd.s32 %s37, %s36
          %s342 = smul.addr %s341, 128
          %s343 = scalar_lea.hbm %s0, %s342
          %s345 = sshll.u32 %s337, 4
          %s346 = int_to_ptr.vmem [resolvable:$true] %s345
          %348 = dma.hbm_to_vmem [thread:$0]  %s343, 128, %s346, %s334
        $region32: #{tpu_custom_call.1} parent=27 // pred_fallthru
          _
        // Predicated region
        $region33: #{tpu_custom_call.1} parent=27 // pred_check
          %p349 = pneg %p91
        $region34: #{tpu_custom_call.1} parent=27 // pred_check_branch
          %351 = sbr.rel (%p349) target = $region36
        $region35: #{tpu_custom_call.1} parent=27 // pred_region
          %s352 = sand.u32 %s29, 1
          %s353 = scalar_lea.sflag [#allocation6], %s352
          %s354 = sand.u32 %s81, 1
          %s355 = smul.addr %s354, 8
          %s356 = scalar_lea.vmem [#allocation5], %s355
          %s358 = ssub.s32 128, 128
          %359 = vsyncadd %s353, %s358
          %s360 = sadd.s32 %s37, %s36
          %s361 = smul.addr %s360, 128
          %s362 = scalar_lea.hbm %s1, %s361
          %s364 = sshll.u32 %s356, 4
          %s365 = int_to_ptr.vmem [resolvable:$true] %s364
          %367 = dma.hbm_to_vmem [thread:$0]  %s362, 128, %s365, %s353
        $region36: #{tpu_custom_call.1} parent=27 // pred_fallthru
          _
        // Predicated region
        $region37: #{tpu_custom_call.1} parent=27 // pred_check
          %p368 = pneg %p119
        $region38: #{tpu_custom_call.1} parent=27 // pred_check_branch
          %370 = sbr.rel (%p368) target = $region40
        $region39: #{tpu_custom_call.1} parent=27 // pred_region
          %s371 = sand.u32 %s29, 1
          %s372 = scalar_lea.sflag [#allocation6], %s371
          %s373 = sand.u32 %s109, 1
          %s374 = smul.addr %s373, 8
          %s375 = scalar_lea.vmem [#allocation7], %s374
          %s377 = ssub.s32 128, 128
          %378 = vsyncadd %s372, %s377
          %s379 = sadd.s32 %s37, %s36
          %s380 = smul.addr %s379, 128
          %s381 = scalar_lea.hbm %s2, %s380
          %s383 = sshll.u32 %s375, 4
          %s384 = int_to_ptr.vmem [resolvable:$true] %s383
          %386 = dma.hbm_to_vmem [thread:$0]  %s381, 128, %s384, %s372
        $region40: #{tpu_custom_call.1} parent=27 // pred_fallthru
          _
      $region28: #{tpu_custom_call.1} parent=5 // pred_fallthru
        _
      %p387 = scmp.le.s32.totalorder 1, %s29
      %p388 = scmp.lt.s32.totalorder %s29, 3
      %p389 = pnand %p387, %p388
      %p390 = pneg %p389
      // Predicated region
      $region41: #{tpu_custom_call.1} parent=5 // pred_check
        _
      $region42: #{tpu_custom_call.1} parent=5 // pred_check_branch
        %392 = sbr.rel (%p389) target = $region44
      $region43: #{tpu_custom_call.1} parent=5 // pred_region
        %s393 = ssub.s32 %s29, 1
        %s394 = sand.u32 %s56, 1
        %s395 = scalar_lea.sflag [#allocation3], %s394
        %s396 = sand.u32 %s56, 1
        %s397 = smul.addr %s396, 8
        %s398 = scalar_lea.vmem [#allocation2], %s397
        // Predicated region
        $region45: #{tpu_custom_call.1} parent=43 // pred_check
          %p399 = pneg %p69
        $region46: #{tpu_custom_call.1} parent=43 // pred_check_branch
          %401 = sbr.rel (%p399) target = $region48
        $region47: #{tpu_custom_call.1} parent=43 // pred_region
          %402 = dma.done %s395, 128
        $region48: #{tpu_custom_call.1} parent=43 // pred_fallthru
          _
        %s403 = sand.u32 %s34, 1
        %s404 = scalar_lea.sflag [#allocation6], %s403
        %s405 = sand.u32 %s84, 1
        %s406 = smul.addr %s405, 8
        %s407 = scalar_lea.vmem [#allocation5], %s406
        // Predicated region
        $region49: #{tpu_custom_call.1} parent=43 // pred_check
          %p408 = pneg %p97
        $region50: #{tpu_custom_call.1} parent=43 // pred_check_branch
          %410 = sbr.rel (%p408) target = $region52
        $region51: #{tpu_custom_call.1} parent=43 // pred_region
          %411 = dma.done %s404, 128
        $region52: #{tpu_custom_call.1} parent=43 // pred_fallthru
          _
        %s412 = sand.u32 %s34, 1
        %s413 = scalar_lea.sflag [#allocation6], %s412
        %s414 = sand.u32 %s112, 1
        %s415 = smul.addr %s414, 8
        %s416 = scalar_lea.vmem [#allocation7], %s415
        // Predicated region
        $region53: #{tpu_custom_call.1} parent=43 // pred_check
          %p417 = pneg %p125
        $region54: #{tpu_custom_call.1} parent=43 // pred_check_branch
          %419 = sbr.rel (%p417) target = $region56
        $region55: #{tpu_custom_call.1} parent=43 // pred_region
          %420 = dma.done %s413, 128
        $region56: #{tpu_custom_call.1} parent=43 // pred_fallthru
          _
        // Predicated region
        $region57: #{tpu_custom_call.1} parent=43 // pred_check
          %p421 = pneg %p146
        $region58: #{tpu_custom_call.1} parent=43 // pred_check_branch
          %423 = sbr.rel (%p421) target = $region60
        $region59: #{tpu_custom_call.1} parent=43 // pred_region
          %424 = dma.done [#allocation9], 256
        $region60: #{tpu_custom_call.1} parent=43 // pred_fallthru
          _
        // Predicated region
        $region61: #{tpu_custom_call.1} parent=43 // pred_check
          %p425 = pneg %p167
        $region62: #{tpu_custom_call.1} parent=43 // pred_check_branch
          %427 = sbr.rel (%p425) target = $region64
        $region63: #{tpu_custom_call.1} parent=43 // pred_region
          %428 = dma.done [#allocation9], 256
        $region64: #{tpu_custom_call.1} parent=43 // pred_fallthru
          _
        // Predicated region
        $region65: #{tpu_custom_call.1} parent=43 // pred_check
          %p429 = pneg %p188
        $region66: #{tpu_custom_call.1} parent=43 // pred_check_branch
          %431 = sbr.rel (%p429) target = $region68
        $region67: #{tpu_custom_call.1} parent=43 // pred_region
          %432 = dma.done [#allocation12], 256
        $region68: #{tpu_custom_call.1} parent=43 // pred_fallthru
          _
        %s433 = sand.u32 %s56, 1
        %s434 = scalar_lea.sflag [#allocation3], %s433
        %s435 = sand.u32 %s56, 1
        %s436 = smul.addr %s435, 8
        %s437 = scalar_lea.vmem [#allocation2], %s436
        %p438 = pneg %p69
        %p439 = pneg %p66
        %s440 = sand.u32 %s34, 1
        %s441 = scalar_lea.sflag [#allocation6], %s440
        %s442 = sand.u32 %s84, 1
        %s443 = smul.addr %s442, 8
        %s444 = scalar_lea.vmem [#allocation5], %s443
        %p445 = pneg %p97
        %p446 = pneg %p94
        %s447 = sand.u32 %s34, 1
        %s448 = scalar_lea.sflag [#allocation6], %s447
        %s449 = sand.u32 %s112, 1
        %s450 = smul.addr %s449, 8
        %s451 = scalar_lea.vmem [#allocation7], %s450
        %p452 = pneg %p125
        %p453 = pneg %p122
        %p454 = pneg %p146
        %p455 = pneg %p143
        %p456 = pneg %p167
        %p457 = pneg %p164
        %p458 = pneg %p188
        %p459 = pneg %p185
        %p460 = pneg %p216
        %p461 = pneg %p213
        %s462 = sand.u32 %s203, 1
        %s463 = scalar_lea.sflag [#allocation4], %s462
        %s464 = sand.u32 %s203, 1
        %s465 = smul.addr %s464, 4
        %s466 = scalar_lea.vmem [#allocation13], %s465
        %p467 = pneg %p244
        %p468 = pneg %p241
        %s469 = sand.u32 %s34, 1
        %s470 = scalar_lea.sflag [#allocation15], %s469
        %s471 = sand.u32 %s231, 1
        %s472 = smul.addr %s471, 4
        %s473 = scalar_lea.vmem [#allocation14], %s472
        %p474 = pneg %p272
        %p475 = pneg %p269
        %s476 = sand.u32 %s34, 1
        %s477 = scalar_lea.sflag [#allocation15], %s476
        %s478 = sand.u32 %s259, 1
        %s479 = smul.addr %s478, 4
        %s480 = scalar_lea.vmem [#allocation16], %s479
        %v482 = vld [vmem:[%s398] sm:$0xff]
        %v483 = vpack.c.bf16 %v482, %v482
        %v484 = vld [vmem:[%s407] sm:$0xff]
        %v485 = vpack.c.bf16 %v484, %v484
        %v486 = vld [vmem:[%s416] sm:$0xff]
        %v487 = vpack.c.bf16 %v486, %v486
        %v488 = vld [vmem:[#allocation8] sm:$0xf]
        %v489 = vld [vmem:[#allocation8 + $0x4] sm:$0xf]
        %v490 = vld [vmem:[#allocation8 + $0x8] sm:$0xf]
        %v491 = vld [vmem:[#allocation8 + $0xc] sm:$0xf]
        %v496 = vunpack.c.l.b16 %v488
        %v497 = vunpack.c.l.b16 %v489
        %v498 = vunpack.c.l.b16 %v490
        %v499 = vunpack.c.l.b16 %v491
        %v500 = vpack.c.b16 %v497, %v496
        %v501 = vpack.c.b16 %v499, %v498
        %vm504 = vcmask 261120
        %v506 = vsel %vm504, %v483, 0
        %508 = vmatprep.subr.bf16.mxu0 0
        %509 = vmatpush1.bf16.msra.mxu0 0
        %510 = vmatprep.subr.bf16.mxu0 0
        %511 = vmatpush1.bf16.msra.mxu0 0
        %512 = vmatprep.subr.bf16.mxu0 0
        %513 = vmatpush1.bf16.msra.mxu0 0
        %514 = vmatprep.subr.bf16.mxu0 0
        %515 = vmatpush1.bf16.msra.mxu0 0
        %516 = vmatprep.subr.bf16.mxu0 0
        %517 = vmatpush1.bf16.msra.mxu0 0
        %518 = vmatprep.subr.bf16.mxu0 0
        %519 = vmatpush1.bf16.msra.mxu0 0
        %520 = vmatprep.subr.bf16.mxu0 0
        %521 = vmatpush1.bf16.msra.mxu0 %v501
        %522 = vmatprep.subr.bf16.mxu0 0
        %523 = vmatpush1.bf16.msra.mxu0 %v500
        %524 = vmatprep.subr.bf16.mxu0 0
        %525 = vmatpush2.bf16.msra.mxu0 0
        %526 = vmatprep.subr.bf16.mxu0 0
        %527 = vmatpush2.bf16.msra.mxu0 0
        %528 = vmatprep.subr.bf16.mxu0 0
        %529 = vmatpush2.bf16.msra.mxu0 0
        %530 = vmatprep.subr.bf16.mxu0 0
        %531 = vmatpush2.bf16.msra.mxu0 0
        %532 = vmatprep.subr.bf16.mxu0 0
        %533 = vmatpush2.bf16.msra.mxu0 0
        %534 = vmatprep.subr.bf16.mxu0 0
        %535 = vmatpush2.bf16.msra.mxu0 0
        %536 = vmatprep.subr.bf16.mxu0 0
        %537 = vmatpush2.bf16.msra.mxu0 0
        %538 = vmatprep.subr.bf16.mxu0 0
        %539 = vmatpush2.bf16.msra.mxu0 0
        %540 = vmatprep.mubr.bf16.mxu0 0
        %541 = vmatmul.mubr.bf16.gmra.mxu0 %v506
        %v542 = vpop.f32.mrf.mxu0
        %v543 = vadd.f32 0.0, %v542
        %v544 = vpop.f32.mrf.mxu0
        %v545 = vpop.f32.mrf.mxu0
        %v546 = vpop.f32.mrf.mxu0
        %547 = vdwg.mxu0
        %v548 = vpack.c.bf16 %v543, %v543
        %vm549 = vcmask 257024
        %550 = vst.msk [vmem:[%s466] sm:$0xf] %vm549, %v548
        %v551 = vld [vmem:[#allocation10] sm:$0xf]
        %v552 = vld [vmem:[#allocation10 + $0x4] sm:$0xf]
        %v553 = vld [vmem:[#allocation10 + $0x8] sm:$0xf]
        %v554 = vld [vmem:[#allocation10 + $0xc] sm:$0xf]
        %v559 = vunpack.c.l.b16 %v551
        %v560 = vunpack.c.l.b16 %v552
        %v561 = vunpack.c.l.b16 %v553
        %v562 = vunpack.c.l.b16 %v554
        %v563 = vpack.c.b16 %v560, %v559
        %v564 = vpack.c.b16 %v562, %v561
        %v568 = vsel %vm504, %v485, 0
        %570 = vmatprep.subr.bf16.mxu0 0
        %571 = vmatpush1.bf16.msra.mxu0 0
        %572 = vmatprep.subr.bf16.mxu0 0
        %573 = vmatpush1.bf16.msra.mxu0 0
        %574 = vmatprep.subr.bf16.mxu0 0
        %575 = vmatpush1.bf16.msra.mxu0 0
        %576 = vmatprep.subr.bf16.mxu0 0
        %577 = vmatpush1.bf16.msra.mxu0 0
        %578 = vmatprep.subr.bf16.mxu0 0
        %579 = vmatpush1.bf16.msra.mxu0 0
        %580 = vmatprep.subr.bf16.mxu0 0
        %581 = vmatpush1.bf16.msra.mxu0 0
        %582 = vmatprep.subr.bf16.mxu0 0
        %583 = vmatpush1.bf16.msra.mxu0 %v564
        %584 = vmatprep.subr.bf16.mxu0 0
        %585 = vmatpush1.bf16.msra.mxu0 %v563
        %586 = vmatprep.subr.bf16.mxu0 0
        %587 = vmatpush2.bf16.msra.mxu0 0
        %588 = vmatprep.subr.bf16.mxu0 0
        %589 = vmatpush2.bf16.msra.mxu0 0
        %590 = vmatprep.subr.bf16.mxu0 0
        %591 = vmatpush2.bf16.msra.mxu0 0
        %592 = vmatprep.subr.bf16.mxu0 0
        %593 = vmatpush2.bf16.msra.mxu0 0
        %594 = vmatprep.subr.bf16.mxu0 0
        %595 = vmatpush2.bf16.msra.mxu0 0
        %596 = vmatprep.subr.bf16.mxu0 0
        %597 = vmatpush2.bf16.msra.mxu0 0
        %598 = vmatprep.subr.bf16.mxu0 0
        %599 = vmatpush2.bf16.msra.mxu0 0
        %600 = vmatprep.subr.bf16.mxu0 0
        %601 = vmatpush2.bf16.msra.mxu0 0
        %602 = vmatprep.mubr.bf16.mxu0 0
        %603 = vmatmul.mubr.bf16.gmra.mxu0 %v568
        %v604 = vpop.f32.mrf.mxu0
        %v605 = vadd.f32 0.0, %v604
        %v606 = vpop.f32.mrf.mxu0
        %v607 = vpop.f32.mrf.mxu0
        %v608 = vpop.f32.mrf.mxu0
        %609 = vdwg.mxu0
        %v610 = vpack.c.bf16 %v605, %v605
        %611 = vst.msk [vmem:[%s473] sm:$0xf] %vm549, %v610
        %v612 = vld [vmem:[#allocation11] sm:$0xf]
        %v613 = vld [vmem:[#allocation11 + $0x4] sm:$0xf]
        %v614 = vld [vmem:[#allocation11 + $0x8] sm:$0xf]
        %v615 = vld [vmem:[#allocation11 + $0xc] sm:$0xf]
        %v620 = vunpack.c.l.b16 %v612
        %v621 = vunpack.c.l.b16 %v613
        %v622 = vunpack.c.l.b16 %v614
        %v623 = vunpack.c.l.b16 %v615
        %v624 = vpack.c.b16 %v621, %v620
        %v625 = vpack.c.b16 %v623, %v622
        %v629 = vsel %vm504, %v487, 0
        %631 = vmatprep.subr.bf16.mxu0 0
        %632 = vmatpush1.bf16.msra.mxu0 0
        %633 = vmatprep.subr.bf16.mxu0 0
        %634 = vmatpush1.bf16.msra.mxu0 0
        %635 = vmatprep.subr.bf16.mxu0 0
        %636 = vmatpush1.bf16.msra.mxu0 0
        %637 = vmatprep.subr.bf16.mxu0 0
        %638 = vmatpush1.bf16.msra.mxu0 0
        %639 = vmatprep.subr.bf16.mxu0 0
        %640 = vmatpush1.bf16.msra.mxu0 0
        %641 = vmatprep.subr.bf16.mxu0 0
        %642 = vmatpush1.bf16.msra.mxu0 0
        %643 = vmatprep.subr.bf16.mxu0 0
        %644 = vmatpush1.bf16.msra.mxu0 %v625
        %645 = vmatprep.subr.bf16.mxu0 0
        %646 = vmatpush1.bf16.msra.mxu0 %v624
        %647 = vmatprep.subr.bf16.mxu0 0
        %648 = vmatpush2.bf16.msra.mxu0 0
        %649 = vmatprep.subr.bf16.mxu0 0
        %650 = vmatpush2.bf16.msra.mxu0 0
        %651 = vmatprep.subr.bf16.mxu0 0
        %652 = vmatpush2.bf16.msra.mxu0 0
        %653 = vmatprep.subr.bf16.mxu0 0
        %654 = vmatpush2.bf16.msra.mxu0 0
        %655 = vmatprep.subr.bf16.mxu0 0
        %656 = vmatpush2.bf16.msra.mxu0 0
        %657 = vmatprep.subr.bf16.mxu0 0
        %658 = vmatpush2.bf16.msra.mxu0 0
        %659 = vmatprep.subr.bf16.mxu0 0
        %660 = vmatpush2.bf16.msra.mxu0 0
        %661 = vmatprep.subr.bf16.mxu0 0
        %662 = vmatpush2.bf16.msra.mxu0 0
        %663 = vmatprep.mubr.bf16.mxu0 0
        %664 = vmatmul.mubr.bf16.gmra.mxu0 %v629
        %v665 = vpop.f32.mrf.mxu0
        %v666 = vadd.f32 0.0, %v665
        %v667 = vpop.f32.mrf.mxu0
        %v668 = vpop.f32.mrf.mxu0
        %v669 = vpop.f32.mrf.mxu0
        %670 = vdwg.mxu0
        %v671 = vpack.c.bf16 %v666, %v666
        %672 = vst.msk [vmem:[%s480] sm:$0xf] %vm549, %v671
        %s673 = sand.u32 %s203, 1
        %s674 = scalar_lea.sflag [#allocation4], %s673
        %s675 = sand.u32 %s203, 1
        %s676 = smul.addr %s675, 4
        %s677 = scalar_lea.vmem [#allocation13], %s676
        %s678 = sand.u32 %s34, 1
        %s679 = scalar_lea.sflag [#allocation15], %s678
        %s680 = sand.u32 %s231, 1
        %s681 = smul.addr %s680, 4
        %s682 = scalar_lea.vmem [#allocation14], %s681
        %s683 = sand.u32 %s34, 1
        %s684 = scalar_lea.sflag [#allocation15], %s683
        %s685 = sand.u32 %s259, 1
        %s686 = smul.addr %s685, 4
        %s687 = scalar_lea.vmem [#allocation16], %s686
        // Predicated region
        $region69: #{tpu_custom_call.1} parent=43 // pred_check
          %p688 = pneg %p213
        $region70: #{tpu_custom_call.1} parent=43 // pred_check_branch
          %690 = sbr.rel (%p688) target = $region72
        $region71: #{tpu_custom_call.1} parent=43 // pred_region
          %s692 = ssub.s32 64, 64
          %693 = vsyncadd %s674, %s692
          %s694 = sadd.s32 %s39, %s38
          %s695 = smul.addr %s694, 64
          %s696 = scalar_lea.hbm %s6, %s695
          %s698 = sshll.u32 %s677, 4
          %s699 = int_to_ptr.vmem [resolvable:$true] %s698
          %701 = dma.vmem_to_hbm [thread:$0]  %s699, 64, %s696, %s674
        $region72: #{tpu_custom_call.1} parent=43 // pred_fallthru
          _
        // Predicated region
        $region73: #{tpu_custom_call.1} parent=43 // pred_check
          %p702 = pneg %p241
        $region74: #{tpu_custom_call.1} parent=43 // pred_check_branch
          %704 = sbr.rel (%p702) target = $region76
        $region75: #{tpu_custom_call.1} parent=43 // pred_region
          %s706 = ssub.s32 64, 64
          %707 = vsyncadd %s679, %s706
          %s708 = sadd.s32 %s39, %s38
          %s709 = smul.addr %s708, 64
          %s710 = scalar_lea.hbm %s7, %s709
          %s712 = sshll.u32 %s682, 4
          %s713 = int_to_ptr.vmem [resolvable:$true] %s712
          %715 = dma.vmem_to_hbm [thread:$0]  %s713, 64, %s710, %s679
        $region76: #{tpu_custom_call.1} parent=43 // pred_fallthru
          _
        // Predicated region
        $region77: #{tpu_custom_call.1} parent=43 // pred_check
          %p716 = pneg %p269
        $region78: #{tpu_custom_call.1} parent=43 // pred_check_branch
          %718 = sbr.rel (%p716) target = $region80
        $region79: #{tpu_custom_call.1} parent=43 // pred_region
          %s720 = ssub.s32 64, 64
          %721 = vsyncadd %s684, %s720
          %s722 = sadd.s32 %s39, %s38
          %s723 = smul.addr %s722, 64
          %s724 = scalar_lea.hbm %s8, %s723
          %s726 = sshll.u32 %s687, 4
          %s727 = int_to_ptr.vmem [resolvable:$true] %s726
          %729 = dma.vmem_to_hbm [thread:$0]  %s727, 64, %s724, %s684
        $region80: #{tpu_custom_call.1} parent=43 // pred_fallthru
          _
      $region44: #{tpu_custom_call.1} parent=5 // pred_fallthru
        _
      %p730 = scmp.le.s32.totalorder 2, %s29
      // Predicated region
      $region81: #{tpu_custom_call.1} parent=5 // pred_check
        %p731 = pneg %p730
      $region82: #{tpu_custom_call.1} parent=5 // pred_check_branch
        %733 = sbr.rel (%p731) target = $region84
      $region83: #{tpu_custom_call.1} parent=5 // pred_region
        %s734 = ssub.s32 %s29, 2
        // Predicated region
        $region85: #{tpu_custom_call.1} parent=83 // pred_check
          %p735 = pneg %p219
        $region86: #{tpu_custom_call.1} parent=83 // pred_check_branch
          %737 = sbr.rel (%p735) target = $region88
        $region87: #{tpu_custom_call.1} parent=83 // pred_region
          %s738 = sand.u32 %s204, 1
          %s739 = scalar_lea.sflag [#allocation4], %s738
          %s740 = sand.u32 %s204, 1
          %s741 = smul.addr %s740, 4
          %s742 = scalar_lea.vmem [#allocation13], %s741
          %743 = dma.done %s739, 64
        $region88: #{tpu_custom_call.1} parent=83 // pred_fallthru
          _
        // Predicated region
        $region89: #{tpu_custom_call.1} parent=83 // pred_check
          %p744 = pneg %p247
        $region90: #{tpu_custom_call.1} parent=83 // pred_check_branch
          %746 = sbr.rel (%p744) target = $region92
        $region91: #{tpu_custom_call.1} parent=83 // pred_region
          %s747 = sand.u32 %s35, 1
          %s748 = scalar_lea.sflag [#allocation15], %s747
          %s749 = sand.u32 %s232, 1
          %s750 = smul.addr %s749, 4
          %s751 = scalar_lea.vmem [#allocation14], %s750
          %752 = dma.done %s748, 64
        $region92: #{tpu_custom_call.1} parent=83 // pred_fallthru
          _
        // Predicated region
        $region93: #{tpu_custom_call.1} parent=83 // pred_check
          %p753 = pneg %p275
        $region94: #{tpu_custom_call.1} parent=83 // pred_check_branch
          %755 = sbr.rel (%p753) target = $region96
        $region95: #{tpu_custom_call.1} parent=83 // pred_region
          %s756 = sand.u32 %s35, 1
          %s757 = scalar_lea.sflag [#allocation15], %s756
          %s758 = sand.u32 %s260, 1
          %s759 = smul.addr %s758, 4
          %s760 = scalar_lea.vmem [#allocation16], %s759
          %761 = dma.done %s757, 64
        $region96: #{tpu_custom_call.1} parent=83 // pred_fallthru
          _
      $region84: #{tpu_custom_call.1} parent=5 // pred_fallthru
        _
    $region6: #{tpu_custom_call.1} parent=1 // loop_footer
      %s33 = sadd.s32 1, %s29
    $region7: #{tpu_custom_call.1} parent=1 // loop_footer_branch
      %28 = sbr.rel target = $region3
    $region8: #{tpu_custom_call.1} parent=1 // loop_exit
      _
    %762 = vsyncpa [#allocation3], 1
    %s763 = scalar_lea.sflag [#allocation3], 1
    %764 = vsyncpa %s763, 1
    %765 = vsyncpa [#allocation6], 1
    %s766 = scalar_lea.sflag [#allocation6], 1
    %767 = vsyncpa %s766, 1
    %768 = vsyncpa [#allocation9], 1
    %769 = vsyncpa [#allocation12], 1
    %770 = vsyncpa [#allocation4], 1
    %s771 = scalar_lea.sflag [#allocation4], 1
    %772 = vsyncpa %s771, 1
    %773 = vsyncpa [#allocation15], 1
    %s774 = scalar_lea.sflag [#allocation15], 1
    %775 = vsyncpa %s774, 1

</llo_original>
